<compile_context>
chip_gen: v5e
topology: v5e:2x2
jax: 0.10.0
libtpu: 0.0.40
codegen_flags: <defaults>
</compile_context>

<pallas_src>
import jax
import jax.numpy as jnp
from jax import lax
from jax.experimental import pallas as pl
from jax.experimental.pallas import tpu as pltpu

LN_EPS = 1e-5          # PyTorch nn.LayerNorm default
F_IN = 85              # input features (kept unpadded in HBM)
TB_CAP = 2048          # max batch-tile rows (VMEM use ~10 MiB at this size)
SPLIT_THRESHOLD = 256  # above this, force >=2 grid steps (v7x megacore)


def _round_up(n, m):
    return ((n + m - 1) // m) * m


def _choose_tiling(B):
    """Minimum number of 16-aligned batch tiles, capped at TB_CAP rows each."""
    n = -(-B // TB_CAP)
    if n == 1 and B > SPLIT_THRESHOLD:
        n = 2                      # use both TensorCores on v7x
    TB = _round_up(-(-B // n), 16)  # 16-row alignment (bf16 sublane pack)
    return TB, TB * n, n


def simplenet_kernel(
    x_ref,    # [TB, 85]  f32
    w1_ref,   # [85, 128] bf16
    p1_ref,   # [3, 128]  f32   rows = (b1, gamma1, beta1)
    w2_ref,   # [128,128] bf16  cols 64..127 zero
    p2_ref,   # [3, 128]  f32   rows = (b2, gamma2, beta2), lanes 64..127 zero
    w3_ref,   # [128,128] bf16  rows 64.. / cols 32.. zero
    b3_ref,   # [1, 128]  f32   lanes 32..127 zero
    wh_ref,   # [128,128] bf16  cols 0:6 action head, col 6 value head, rest zero
    bh_ref,   # [1, 128]  f32   same packing as wh
    out_ref,  # [TB, 128] f32
):
    # Cast input in-kernel (avoids an extra XLA pad/cast pass over HBM).
    x = x_ref[...].astype(jnp.bfloat16)

    # fc1 -> ln1 (two-pass, f32) -> relu
    h = jnp.dot(x, w1_ref[...], preferred_element_type=jnp.float32) + p1_ref[0:1, :]
    mu = jnp.sum(h, axis=-1, keepdims=True) * (1.0 / 128.0)
    d = h - mu
    var = jnp.sum(d * d, axis=-1, keepdims=True) * (1.0 / 128.0)
    h = d * lax.rsqrt(var + LN_EPS) * p1_ref[1:2, :] + p1_ref[2:3, :]
    h = jnp.maximum(h, 0.0)

    # fc2 (64 real features, lane-padded to 128) -> ln2 over the 64 real lanes -> relu
    h = jnp.dot(h.astype(jnp.bfloat16), w2_ref[...],
                preferred_element_type=jnp.float32) + p2_ref[0:1, :]
    real = lax.broadcasted_iota(jnp.int32, (1, 128), 1) < 64
    mu = jnp.sum(h, axis=-1, keepdims=True) * (1.0 / 64.0)   # padded lanes are exact 0
    d = h - mu
    var = jnp.sum(jnp.where(real, d * d, 0.0), axis=-1, keepdims=True) * (1.0 / 64.0)
    # gamma/beta are zero on padded lanes, so those lanes come out exactly zero.
    h = d * lax.rsqrt(var + LN_EPS) * p2_ref[1:2, :] + p2_ref[2:3, :]
    h = jnp.maximum(h, 0.0)

    # fc3 (32 real features, lane-padded to 128) -> relu
    h = jnp.dot(h.astype(jnp.bfloat16), w3_ref[...],
                preferred_element_type=jnp.float32) + b3_ref[...]
    h = jnp.maximum(h, 0.0)

    # merged action/value heads (lane-dense [TB,128] output; sliced in the wrapper)
    out_ref[...] = jnp.dot(h.astype(jnp.bfloat16), wh_ref[...],
                           preferred_element_type=jnp.float32) + bh_ref[...]


def simplenet_forward(x, packed):
    """x: [B, 85] float32. packed: tuple from pack_params.

    Returns (action_logits [B, 6], state_value [B, 1]) in float32.
    """
    B = x.shape[0]
    TB, Bp, n = _choose_tiling(B)
    xp = x if Bp == B else jnp.pad(x, ((0, Bp - B), (0, 0)))  # rows only, f32, no cast

    w1, p1, w2, p2, w3, b3, wh, bh = packed

    in_specs = [
        pl.BlockSpec((TB, F_IN), lambda i: (i, 0)),    # x: tiled over batch (full 85 lanes)
        pl.BlockSpec((F_IN, 128), lambda i: (0, 0)),   # w1 (VMEM-resident)
        pl.BlockSpec((3, 128), lambda i: (0, 0)),      # b1/g1/be1
        pl.BlockSpec((128, 128), lambda i: (0, 0)),    # w2
        pl.BlockSpec((3, 128), lambda i: (0, 0)),      # b2/g2/be2
        pl.BlockSpec((128, 128), lambda i: (0, 0)),    # w3
        pl.BlockSpec((1, 128), lambda i: (0, 0)),      # b3
        pl.BlockSpec((128, 128), lambda i: (0, 0)),    # merged heads W
        pl.BlockSpec((1, 128), lambda i: (0, 0)),      # merged heads b
    ]
    out_specs = pl.BlockSpec((TB, 128), lambda i: (i, 0))

    out = pl.pallas_call(
        simplenet_kernel,
        out_shape=jax.ShapeDtypeStruct((Bp, 128), jnp.float32),
        grid=(n,),
        in_specs=in_specs,
        out_specs=out_specs,
        compiler_params=pltpu.CompilerParams(
            dimension_semantics=("parallel",),
            vmem_limit_bytes=32 * 1024 * 1024),
    )(xp, w1, p1, w2, p2, w3, b3, wh, bh)

    logits = out[:B, :6]
    value = out[:B, 6:7]
    return logits, value


def init_params(key):
    """Deterministic synthetic parameters matching SimpleNet's shapes (f32).

    nn.Linear(in, out) weight is [out, in] in PyTorch; we store the transpose
    [in, out] so the math is x @ W + b.  Biases / LN params are kept 2D [1, N].
    """
    keys = jax.random.split(key, 5)

    def lin(k, fan_in, fan_out):
        kw, kb = jax.random.split(k)
        bound = 1.0 / jnp.sqrt(float(fan_in))  # PyTorch default init range
        w = jax.random.uniform(kw, (fan_in, fan_out), jnp.float32, -bound, bound)
        b = jax.random.uniform(kb, (1, fan_out), jnp.float32, -bound, bound)
        return w, b

    w1, b1 = lin(keys[0], 85, 128)
    w2, b2 = lin(keys[1], 128, 64)
    w3, b3 = lin(keys[2], 64, 32)
    wa, ba = lin(keys[3], 32, 6)
    wv, bv = lin(keys[4], 32, 1)
    g1 = jnp.ones((1, 128), jnp.float32)
    be1 = jnp.zeros((1, 128), jnp.float32)
    g2 = jnp.ones((1, 64), jnp.float32)
    be2 = jnp.zeros((1, 64), jnp.float32)
    return dict(w1=w1, b1=b1, g1=g1, be1=be1,
                w2=w2, b2=b2, g2=g2, be2=be2,
                w3=w3, b3=b3, wa=wa, ba=ba, wv=wv, bv=bv)


def pack_params(p):
    """Kernel-ready params: matmul weights in bf16, everything lane-padded to 128
    so all intermediates stay lane-dense; padded weight columns / biases / LN
    gamma-beta are zero so padded lanes remain exact zeros through the network."""
    w1 = p["w1"].astype(jnp.bfloat16)                                   # [85,128]
    p1 = jnp.concatenate([p["b1"], p["g1"], p["be1"]], axis=0)          # [3,128] f32

    w2 = jnp.zeros((128, 128), jnp.bfloat16)
    w2 = w2.at[:, :64].set(p["w2"].astype(jnp.bfloat16))                # [128,128]
    p2 = jnp.zeros((3, 128), jnp.float32)
    p2 = p2.at[0, :64].set(p["b2"][0])
    p2 = p2.at[1, :64].set(p["g2"][0])
    p2 = p2.at[2, :64].set(p["be2"][0])                                 # [3,128]

    w3 = jnp.zeros((128, 128), jnp.bfloat16)
    w3 = w3.at[:64, :32].set(p["w3"].astype(jnp.bfloat16))              # [128,128]
    b3 = jnp.zeros((1, 128), jnp.float32)
    b3 = b3.at[:, :32].set(p["b3"])                                     # [1,128]

    wh = jnp.zeros((128, 128), jnp.bfloat16)
    wh = wh.at[:32, :6].set(p["wa"].astype(jnp.bfloat16))
    wh = wh.at[:32, 6:7].set(p["wv"].astype(jnp.bfloat16))              # [128,128]
    bh = jnp.zeros((1, 128), jnp.float32)
    bh = bh.at[:, :6].set(p["ba"])
    bh = bh.at[:, 6:7].set(p["bv"])                                     # [1,128]
    return (w1, p1, w2, p2, w3, b3, wh, bh)


def simplenet_ref(x, p):
    """Pure-JAX f32 reference (exact module semantics) for correctness checks."""
    def ln(h, g, b):
        mu = jnp.mean(h, axis=-1, keepdims=True)
        var = jnp.mean((h - mu) ** 2, axis=-1, keepdims=True)
        return (h - mu) * lax.rsqrt(var + LN_EPS) * g + b

    h = x @ p["w1"] + p["b1"]
    h = jnp.maximum(ln(h, p["g1"], p["be1"]), 0.0)
    h = h @ p["w2"] + p["b2"]
    h = jnp.maximum(ln(h, p["g2"], p["be2"]), 0.0)
    h = jnp.maximum(h @ p["w3"] + p["b3"], 0.0)
    return h @ p["wa"] + p["ba"], h @ p["wv"] + p["bv"]


if __name__ == "__main__":
    key = jax.random.PRNGKey(0)
    kp, kx1, kx2 = jax.random.split(key, 3)
    raw = init_params(kp)
    packed = pack_params(raw)

    # Small batch (single grid step).
    B = 8
    x = jax.random.normal(kx1, (B, 85), jnp.float32)
    logits, value = jax.block_until_ready(simplenet_forward(x, packed))
    ref_logits, ref_value = simplenet_ref(x, raw)
    assert logits.shape == (B, 6) and value.shape == (B, 1)
    # bf16 matmul operands (f32 accumulation) -> loosen tolerance vs f32 reference.
    assert jnp.allclose(logits, ref_logits, atol=5e-2, rtol=5e-2)
    assert jnp.allclose(value, ref_value, atol=5e-2, rtol=5e-2)

    # Larger, non-multiple batch: exercises the 2-step parallel grid + row padding.
    B2 = 600
    x2 = jax.random.normal(kx2, (B2, 85), jnp.float32)
    logits2, value2 = jax.block_until_ready(simplenet_forward(x2, packed))
    ref_logits2, ref_value2 = simplenet_ref(x2, raw)
    assert logits2.shape == (B2, 6) and value2.shape == (B2, 1)
    assert jnp.allclose(logits2, ref_logits2, atol=5e-2, rtol=5e-2)
    assert jnp.allclose(value2, ref_value2, atol=5e-2, rtol=5e-2)

    print("KERNEL_OK")
</pallas_src>

<mosaic_0001>
module attributes {stable_mosaic.version = 11 : i64} {
  func.func @simplenet_kernel(%arg0: i32, %arg1: memref<16x85xf32, #tpu.memory_space<vmem>>, %arg2: memref<85x128xbf16, #tpu.memory_space<vmem>>, %arg3: memref<3x128xf32, #tpu.memory_space<vmem>>, %arg4: memref<128x128xbf16, #tpu.memory_space<vmem>>, %arg5: memref<3x128xf32, #tpu.memory_space<vmem>>, %arg6: memref<128x128xbf16, #tpu.memory_space<vmem>>, %arg7: memref<1x128xf32, #tpu.memory_space<vmem>>, %arg8: memref<128x128xbf16, #tpu.memory_space<vmem>>, %arg9: memref<1x128xf32, #tpu.memory_space<vmem>>, %arg10: memref<16x128xf32, #tpu.memory_space<vmem>>) attributes {dimension_semantics = [#tpu.dimension_semantics<parallel>], iteration_bounds = array<i64: 1>, scalar_prefetch = 0 : i64, scratch_operands = 0 : i64, tpu.core_type = #tpu.core_type<tc>, window_params = [{transform_indices = @transform_0, window_bounds = array<i64: 16, 85>}, {pipeline_mode = #tpu.pipeline_mode<synchronous>, transform_indices = @transform_1, window_bounds = array<i64: 85, 128>}, {pipeline_mode = #tpu.pipeline_mode<synchronous>, transform_indices = @transform_2, window_bounds = array<i64: 3, 128>}, {pipeline_mode = #tpu.pipeline_mode<synchronous>, transform_indices = @transform_3, window_bounds = array<i64: 128, 128>}, {pipeline_mode = #tpu.pipeline_mode<synchronous>, transform_indices = @transform_4, window_bounds = array<i64: 3, 128>}, {pipeline_mode = #tpu.pipeline_mode<synchronous>, transform_indices = @transform_5, window_bounds = array<i64: 128, 128>}, {pipeline_mode = #tpu.pipeline_mode<synchronous>, transform_indices = @transform_6, window_bounds = array<i64: 1, 128>}, {pipeline_mode = #tpu.pipeline_mode<synchronous>, transform_indices = @transform_7, window_bounds = array<i64: 128, 128>}, {pipeline_mode = #tpu.pipeline_mode<synchronous>, transform_indices = @transform_8, window_bounds = array<i64: 1, 128>}, {transform_indices = @transform_9, window_bounds = array<i64: 16, 128>}]} {
    %c0 = arith.constant 0 : index
    %c0_0 = arith.constant 0 : index
    %0 = vector.load %arg1[%c0, %c0_0] : memref<16x85xf32, #tpu.memory_space<vmem>>, vector<16x85xf32>
    %1 = arith.truncf %0 : vector<16x85xf32> to vector<16x85xbf16>
    %c0_1 = arith.constant 0 : index
    %c0_2 = arith.constant 0 : index
    %2 = vector.load %arg2[%c0_1, %c0_2] : memref<85x128xbf16, #tpu.memory_space<vmem>>, vector<85x128xbf16>
    %cst = arith.constant dense<0.000000e+00> : vector<16x128xf32>
    %3 = tpu.matmul %1, %2, %cst {dimension_numbers = #tpu.dot_dimension_numbers<[1], [0], [0], [1], [0, 0, 1, 1], [], []>} : vector<16x85xbf16>, vector<85x128xbf16>, vector<16x128xf32> -> vector<16x128xf32>
    %c0_3 = arith.constant 0 : index
    %c0_4 = arith.constant 0 : index
    %4 = vector.load %arg3[%c0_3, %c0_4] : memref<3x128xf32, #tpu.memory_space<vmem>>, vector<1x128xf32>
    %5 = vector.broadcast %4 : vector<1x128xf32> to vector<16x128xf32>
    %6 = arith.addf %3, %5 : vector<16x128xf32>
    %cst_5 = arith.constant dense<0.000000e+00> : vector<16xf32>
    %7 = vector.multi_reduction <add>, %6, %cst_5 [1] : vector<16x128xf32> to vector<16xf32>
    %8 = vector.shape_cast %7 : vector<16xf32> to vector<16x1xf32>
    %cst_6 = arith.constant 7.812500e-03 : f32
    %9 = vector.broadcast %cst_6 : f32 to vector<16x1xf32>
    %10 = arith.mulf %8, %9 : vector<16x1xf32>
    %11 = vector.broadcast %10 : vector<16x1xf32> to vector<16x128xf32>
    %12 = arith.subf %6, %11 : vector<16x128xf32>
    %13 = arith.mulf %12, %12 : vector<16x128xf32>
    %cst_7 = arith.constant dense<0.000000e+00> : vector<16xf32>
    %14 = vector.multi_reduction <add>, %13, %cst_7 [1] : vector<16x128xf32> to vector<16xf32>
    %15 = vector.shape_cast %14 : vector<16xf32> to vector<16x1xf32>
    %cst_8 = arith.constant 7.812500e-03 : f32
    %16 = vector.broadcast %cst_8 : f32 to vector<16x1xf32>
    %17 = arith.mulf %15, %16 : vector<16x1xf32>
    %cst_9 = arith.constant 9.99999974E-6 : f32
    %18 = vector.broadcast %cst_9 : f32 to vector<16x1xf32>
    %19 = arith.addf %17, %18 : vector<16x1xf32>
    %20 = math.rsqrt %19 : vector<16x1xf32>
    %21 = vector.broadcast %20 : vector<16x1xf32> to vector<16x128xf32>
    %22 = arith.mulf %12, %21 : vector<16x128xf32>
    %c1 = arith.constant 1 : index
    %c0_10 = arith.constant 0 : index
    %23 = vector.load %arg3[%c1, %c0_10] : memref<3x128xf32, #tpu.memory_space<vmem>>, vector<1x128xf32>
    %24 = vector.broadcast %23 : vector<1x128xf32> to vector<16x128xf32>
    %25 = arith.mulf %22, %24 : vector<16x128xf32>
    %c2 = arith.constant 2 : index
    %c0_11 = arith.constant 0 : index
    %26 = vector.load %arg3[%c2, %c0_11] : memref<3x128xf32, #tpu.memory_space<vmem>>, vector<1x128xf32>
    %27 = vector.broadcast %26 : vector<1x128xf32> to vector<16x128xf32>
    %28 = arith.addf %25, %27 : vector<16x128xf32>
    %cst_12 = arith.constant 0.000000e+00 : f32
    %29 = vector.broadcast %cst_12 : f32 to vector<16x128xf32>
    %30 = arith.maximumf %28, %29 : vector<16x128xf32>
    %31 = arith.truncf %30 : vector<16x128xf32> to vector<16x128xbf16>
    %c0_13 = arith.constant 0 : index
    %c0_14 = arith.constant 0 : index
    %32 = vector.load %arg4[%c0_13, %c0_14] : memref<128x128xbf16, #tpu.memory_space<vmem>>, vector<128x128xbf16>
    %cst_15 = arith.constant dense<0.000000e+00> : vector<16x128xf32>
    %33 = tpu.matmul %31, %32, %cst_15 {dimension_numbers = #tpu.dot_dimension_numbers<[1], [0], [0], [1], [0, 0, 1, 1], [], []>} : vector<16x128xbf16>, vector<128x128xbf16>, vector<16x128xf32> -> vector<16x128xf32>
    %c0_16 = arith.constant 0 : index
    %c0_17 = arith.constant 0 : index
    %34 = vector.load %arg5[%c0_16, %c0_17] : memref<3x128xf32, #tpu.memory_space<vmem>>, vector<1x128xf32>
    %35 = vector.broadcast %34 : vector<1x128xf32> to vector<16x128xf32>
    %36 = arith.addf %33, %35 : vector<16x128xf32>
    %37 = tpu.iota {dimensions = array<i32: 1>} : vector<1x128xi32>
    %c64_i32 = arith.constant 64 : i32
    %38 = vector.broadcast %c64_i32 : i32 to vector<1x128xi32>
    %39 = arith.cmpi slt, %37, %38 : vector<1x128xi32>
    %cst_18 = arith.constant dense<0.000000e+00> : vector<16xf32>
    %40 = vector.multi_reduction <add>, %36, %cst_18 [1] : vector<16x128xf32> to vector<16xf32>
    %41 = vector.shape_cast %40 : vector<16xf32> to vector<16x1xf32>
    %cst_19 = arith.constant 1.562500e-02 : f32
    %42 = vector.broadcast %cst_19 : f32 to vector<16x1xf32>
    %43 = arith.mulf %41, %42 : vector<16x1xf32>
    %44 = vector.broadcast %43 : vector<16x1xf32> to vector<16x128xf32>
    %45 = arith.subf %36, %44 : vector<16x128xf32>
    %46 = arith.mulf %45, %45 : vector<16x128xf32>
    %cst_20 = arith.constant 0.000000e+00 : f32
    %47 = vector.shape_cast %39 : vector<1x128xi1> to vector<1x128xi1>
    %48 = vector.broadcast %47 : vector<1x128xi1> to vector<16x128xi1>
    %49 = vector.broadcast %cst_20 : f32 to vector<16x128xf32>
    %50 = arith.select %48, %46, %49 : vector<16x128xi1>, vector<16x128xf32>
    %cst_21 = arith.constant dense<0.000000e+00> : vector<16xf32>
    %51 = vector.multi_reduction <add>, %50, %cst_21 [1] : vector<16x128xf32> to vector<16xf32>
    %52 = vector.shape_cast %51 : vector<16xf32> to vector<16x1xf32>
    %cst_22 = arith.constant 1.562500e-02 : f32
    %53 = vector.broadcast %cst_22 : f32 to vector<16x1xf32>
    %54 = arith.mulf %52, %53 : vector<16x1xf32>
    %cst_23 = arith.constant 9.99999974E-6 : f32
    %55 = vector.broadcast %cst_23 : f32 to vector<16x1xf32>
    %56 = arith.addf %54, %55 : vector<16x1xf32>
    %57 = math.rsqrt %56 : vector<16x1xf32>
    %58 = vector.broadcast %57 : vector<16x1xf32> to vector<16x128xf32>
    %59 = arith.mulf %45, %58 : vector<16x128xf32>
    %c1_24 = arith.constant 1 : index
    %c0_25 = arith.constant 0 : index
    %60 = vector.load %arg5[%c1_24, %c0_25] : memref<3x128xf32, #tpu.memory_space<vmem>>, vector<1x128xf32>
    %61 = vector.broadcast %60 : vector<1x128xf32> to vector<16x128xf32>
    %62 = arith.mulf %59, %61 : vector<16x128xf32>
    %c2_26 = arith.constant 2 : index
    %c0_27 = arith.constant 0 : index
    %63 = vector.load %arg5[%c2_26, %c0_27] : memref<3x128xf32, #tpu.memory_space<vmem>>, vector<1x128xf32>
    %64 = vector.broadcast %63 : vector<1x128xf32> to vector<16x128xf32>
    %65 = arith.addf %62, %64 : vector<16x128xf32>
    %cst_28 = arith.constant 0.000000e+00 : f32
    %66 = vector.broadcast %cst_28 : f32 to vector<16x128xf32>
    %67 = arith.maximumf %65, %66 : vector<16x128xf32>
    %68 = arith.truncf %67 : vector<16x128xf32> to vector<16x128xbf16>
    %c0_29 = arith.constant 0 : index
    %c0_30 = arith.constant 0 : index
    %69 = vector.load %arg6[%c0_29, %c0_30] : memref<128x128xbf16, #tpu.memory_space<vmem>>, vector<128x128xbf16>
    %cst_31 = arith.constant dense<0.000000e+00> : vector<16x128xf32>
    %70 = tpu.matmul %68, %69, %cst_31 {dimension_numbers = #tpu.dot_dimension_numbers<[1], [0], [0], [1], [0, 0, 1, 1], [], []>} : vector<16x128xbf16>, vector<128x128xbf16>, vector<16x128xf32> -> vector<16x128xf32>
    %c0_32 = arith.constant 0 : index
    %c0_33 = arith.constant 0 : index
    %71 = vector.load %arg7[%c0_32, %c0_33] : memref<1x128xf32, #tpu.memory_space<vmem>>, vector<1x128xf32>
    %72 = vector.broadcast %71 : vector<1x128xf32> to vector<16x128xf32>
    %73 = arith.addf %70, %72 : vector<16x128xf32>
    %cst_34 = arith.constant 0.000000e+00 : f32
    %74 = vector.broadcast %cst_34 : f32 to vector<16x128xf32>
    %75 = arith.maximumf %73, %74 : vector<16x128xf32>
    %76 = arith.truncf %75 : vector<16x128xf32> to vector<16x128xbf16>
    %c0_35 = arith.constant 0 : index
    %c0_36 = arith.constant 0 : index
    %77 = vector.load %arg8[%c0_35, %c0_36] : memref<128x128xbf16, #tpu.memory_space<vmem>>, vector<128x128xbf16>
    %cst_37 = arith.constant dense<0.000000e+00> : vector<16x128xf32>
    %78 = tpu.matmul %76, %77, %cst_37 {dimension_numbers = #tpu.dot_dimension_numbers<[1], [0], [0], [1], [0, 0, 1, 1], [], []>} : vector<16x128xbf16>, vector<128x128xbf16>, vector<16x128xf32> -> vector<16x128xf32>
    %c0_38 = arith.constant 0 : index
    %c0_39 = arith.constant 0 : index
    %79 = vector.load %arg9[%c0_38, %c0_39] : memref<1x128xf32, #tpu.memory_space<vmem>>, vector<1x128xf32>
    %80 = vector.broadcast %79 : vector<1x128xf32> to vector<16x128xf32>
    %81 = arith.addf %78, %80 : vector<16x128xf32>
    %c0_40 = arith.constant 0 : index
    %c0_41 = arith.constant 0 : index
    %82 = vector.load %arg10[%c0_40, %c0_41] : memref<16x128xf32, #tpu.memory_space<vmem>>, vector<16x128xf32>
    tpu.vector_store %arg10[%c0_40, %c0_41], %81 {strides = array<i32>} : memref<16x128xf32, #tpu.memory_space<vmem>>, vector<16x128xf32>,
    return
  }
  func.func @transform_0(%arg0: i32) -> (i32, i32) {
    %c0_i32 = arith.constant 0 : i32
    %c0_i32_0 = arith.constant 0 : i32
    return %arg0, %c0_i32 : i32, i32
  }
  func.func @transform_1(%arg0: i32) -> (i32, i32) {
    %c0_i32 = arith.constant 0 : i32
    %c0_i32_0 = arith.constant 0 : i32
    %c0_i32_1 = arith.constant 0 : i32
    return %c0_i32, %c0_i32_0 : i32, i32
  }
  func.func @transform_2(%arg0: i32) -> (i32, i32) {
    %c0_i32 = arith.constant 0 : i32
    %c0_i32_0 = arith.constant 0 : i32
    %c0_i32_1 = arith.constant 0 : i32
    return %c0_i32, %c0_i32_0 : i32, i32
  }
  func.func @transform_3(%arg0: i32) -> (i32, i32) {
    %c0_i32 = arith.constant 0 : i32
    %c0_i32_0 = arith.constant 0 : i32
    %c0_i32_1 = arith.constant 0 : i32
    return %c0_i32, %c0_i32_0 : i32, i32
  }
  func.func @transform_4(%arg0: i32) -> (i32, i32) {
    %c0_i32 = arith.constant 0 : i32
    %c0_i32_0 = arith.constant 0 : i32
    %c0_i32_1 = arith.constant 0 : i32
    return %c0_i32, %c0_i32_0 : i32, i32
  }
  func.func @transform_5(%arg0: i32) -> (i32, i32) {
    %c0_i32 = arith.constant 0 : i32
    %c0_i32_0 = arith.constant 0 : i32
    %c0_i32_1 = arith.constant 0 : i32
    return %c0_i32, %c0_i32_0 : i32, i32
  }
  func.func @transform_6(%arg0: i32) -> (i32, i32) {
    %c0_i32 = arith.constant 0 : i32
    %c0_i32_0 = arith.constant 0 : i32
    %c0_i32_1 = arith.constant 0 : i32
    return %c0_i32, %c0_i32_0 : i32, i32
  }
  func.func @transform_7(%arg0: i32) -> (i32, i32) {
    %c0_i32 = arith.constant 0 : i32
    %c0_i32_0 = arith.constant 0 : i32
    %c0_i32_1 = arith.constant 0 : i32
    return %c0_i32, %c0_i32_0 : i32, i32
  }
  func.func @transform_8(%arg0: i32) -> (i32, i32) {
    %c0_i32 = arith.constant 0 : i32
    %c0_i32_0 = arith.constant 0 : i32
    %c0_i32_1 = arith.constant 0 : i32
    return %c0_i32, %c0_i32_0 : i32, i32
  }
  func.func @transform_9(%arg0: i32) -> (i32, i32) {
    %c0_i32 = arith.constant 0 : i32
    %c0_i32_0 = arith.constant 0 : i32
    return %arg0, %c0_i32 : i32, i32
  }
}

</mosaic_0001>

<llo_original>
// kernel: tpu_custom_call.1
$region0: #{tpu_custom_call.1}
  #allocation0 [shape = 'u32[]', space=smem, size = 0x4, offset = 0x4, fixed_abs, tag = 'smem constant byte address 0x4 - core index']
  #allocation1 [shape = 'u32[72,128]{1,0:T(1,128)}', space=vmem, size = 0x9000, scoped, tag = 'internal scratch']
  %s0 = inlined_call_operand.hbm [shape: f32[16,85], index: 0, kind: input, shape index: {}]
  %s1 = inlined_call_operand.hbm [shape: bf16[85,128], index: 1, kind: input, shape index: {}]
  %s2 = inlined_call_operand.hbm [shape: f32[3,128], index: 2, kind: input, shape index: {}]
  %s3 = inlined_call_operand.hbm [shape: bf16[128,128], index: 3, kind: input, shape index: {}]
  %s4 = inlined_call_operand.hbm [shape: f32[3,128], index: 4, kind: input, shape index: {}]
  %s5 = inlined_call_operand.hbm [shape: bf16[128,128], index: 5, kind: input, shape index: {}]
  %s6 = inlined_call_operand.vmem [shape: f32[1,128], index: 6, kind: input, shape index: {}]
  %s7 = inlined_call_operand.hbm [shape: bf16[128,128], index: 7, kind: input, shape index: {}]
  %s8 = inlined_call_operand.vmem [shape: f32[1,128], index: 8, kind: input, shape index: {}]
  %s9 = inlined_call_operand.hbm [shape: f32[16,128], index: 9, kind: output, shape index: {}]
  %s10 = sld [smem:[#allocation0]]
  $region74: #{tpu_custom_call.1} parent=0
    _
  %s12 = ssub.s32 1, %s10
  %s13 = scalar_select 0, %s12, %s10
  $region1: #{tpu_custom_call.1} parent=0
    #allocation2 [shape = 'u8[8192]{0}', space=vmem, size = 0x2000, scoped, tag = 'input window, operand 0, single buffered']
    #allocation3 [shape = 's32[1]{0}', space=sflag, size = 0x4, scoped, tag = 'scoped memory for tpu_custom_call.1']
    #allocation4 [shape = 's32[1]{0}', space=sflag, size = 0x4, scoped, tag = 'scoped memory for tpu_custom_call.1']
    #allocation5 [shape = 'u8[22528]{0}', space=vmem, size = 0x5800, scoped, tag = 'input window, operand 1, single buffered']
    #allocation6 [shape = 's32[1]{0}', space=sflag, size = 0x4, scoped, tag = 'scoped memory for tpu_custom_call.1']
    #allocation7 [shape = 'u8[2048]{0}', space=vmem, size = 0x800, scoped, tag = 'input window, operand 2, single buffered']
    #allocation8 [shape = 'u8[32768]{0}', space=vmem, size = 0x8000, scoped, tag = 'input window, operand 3, single buffered']
    #allocation9 [shape = 's32[1]{0}', space=sflag, size = 0x4, scoped, tag = 'scoped memory for tpu_custom_call.1']
    #allocation10 [shape = 'u8[2048]{0}', space=vmem, size = 0x800, scoped, tag = 'input window, operand 4, single buffered']
    #allocation11 [shape = 'u8[32768]{0}', space=vmem, size = 0x8000, scoped, tag = 'input window, operand 5, single buffered']
    #allocation12 [shape = 's32[1]{0}', space=sflag, size = 0x4, scoped, tag = 'scoped memory for tpu_custom_call.1']
    #allocation13 [shape = 'u8[32768]{0}', space=vmem, size = 0x8000, scoped, tag = 'input window, operand 7, single buffered']
    #allocation14 [shape = 'u8[8192]{0}', space=vmem, size = 0x2000, scoped, tag = 'output window, operand 0, single buffered']
    %14 = vsyncpa [#allocation3], 0
    %15 = vsyncpa [#allocation6], 0
    %16 = vsyncpa [#allocation9], 0
    %17 = vsyncpa [#allocation12], 0
    %18 = vsyncpa [#allocation4], 0
    // Predicated region
    $region2: #{tpu_custom_call.1} parent=1 // pred_check
      _
    $region3: #{tpu_custom_call.1} parent=1 // pred_check_branch
      %20 = sbr.rel (0) target = $region5
    $region4: #{tpu_custom_call.1} parent=1 // pred_region
      %22 = vsyncadd [#allocation3], 0
      %s23 = sshll.u32 %s0, 4
      %s24 = int_to_ptr.hbm [resolvable:$true] %s23
      %s25 = sshll.u32 [#allocation2], 4
      %s26 = int_to_ptr.vmem [resolvable:$true] %s25
      %31 = dma.hbm_to_vmem [thread:$0]  %s24, 256, %s26, [#allocation3], 128, 128, 8
    $region5: #{tpu_custom_call.1} parent=1 // pred_fallthru
      _
    // Predicated region
    $region6: #{tpu_custom_call.1} parent=1 // pred_check
      _
    $region7: #{tpu_custom_call.1} parent=1 // pred_check_branch
      %33 = sbr.rel (0) target = $region9
    $region8: #{tpu_custom_call.1} parent=1 // pred_region
      %35 = vsyncadd [#allocation6], 0
      %s36 = sshll.u32 %s1, 4
      %s37 = int_to_ptr.hbm [resolvable:$true] %s36
      %s38 = sshll.u32 [#allocation5], 4
      %s39 = int_to_ptr.vmem [resolvable:$true] %s38
      %44 = dma.hbm_to_vmem [thread:$0]  %s37, 704, %s39, [#allocation6], 64, 64, 4
    $region9: #{tpu_custom_call.1} parent=1 // pred_fallthru
      _
    // Predicated region
    $region10: #{tpu_custom_call.1} parent=1 // pred_check
      _
    $region11: #{tpu_custom_call.1} parent=1 // pred_check_branch
      %46 = sbr.rel (0) target = $region13
    $region12: #{tpu_custom_call.1} parent=1 // pred_region
      %48 = vsyncadd [#allocation6], 0
      %s50 = sshll.u32 %s2, 4
      %s51 = int_to_ptr.hbm [resolvable:$true] %s50
      %s52 = sshll.u32 [#allocation7], 4
      %s53 = int_to_ptr.vmem [resolvable:$true] %s52
      %55 = dma.hbm_to_vmem [thread:$0]  %s51, 64, %s53, [#allocation6]
    $region13: #{tpu_custom_call.1} parent=1 // pred_fallthru
      _
    // Predicated region
    $region14: #{tpu_custom_call.1} parent=1 // pred_check
      _
    $region15: #{tpu_custom_call.1} parent=1 // pred_check_branch
      %57 = sbr.rel (0) target = $region17
    $region16: #{tpu_custom_call.1} parent=1 // pred_region
      %59 = vsyncadd [#allocation9], 0
      %s60 = sshll.u32 %s3, 4
      %s61 = int_to_ptr.hbm [resolvable:$true] %s60
      %s62 = sshll.u32 [#allocation8], 4
      %s63 = int_to_ptr.vmem [resolvable:$true] %s62
      %68 = dma.hbm_to_vmem [thread:$0]  %s61, 1024, %s63, [#allocation9], 64, 64, 4
    $region17: #{tpu_custom_call.1} parent=1 // pred_fallthru
      _
    // Predicated region
    $region18: #{tpu_custom_call.1} parent=1 // pred_check
      _
    $region19: #{tpu_custom_call.1} parent=1 // pred_check_branch
      %70 = sbr.rel (0) target = $region21
    $region20: #{tpu_custom_call.1} parent=1 // pred_region
      %72 = vsyncadd [#allocation9], 0
      %s74 = sshll.u32 %s4, 4
      %s75 = int_to_ptr.hbm [resolvable:$true] %s74
      %s76 = sshll.u32 [#allocation10], 4
      %s77 = int_to_ptr.vmem [resolvable:$true] %s76
      %79 = dma.hbm_to_vmem [thread:$0]  %s75, 64, %s77, [#allocation9]
    $region21: #{tpu_custom_call.1} parent=1 // pred_fallthru
      _
    // Predicated region
    $region22: #{tpu_custom_call.1} parent=1 // pred_check
      _
    $region23: #{tpu_custom_call.1} parent=1 // pred_check_branch
      %81 = sbr.rel (0) target = $region25
    $region24: #{tpu_custom_call.1} parent=1 // pred_region
      %83 = vsyncadd [#allocation12], 0
      %s84 = sshll.u32 %s5, 4
      %s85 = int_to_ptr.hbm [resolvable:$true] %s84
      %s86 = sshll.u32 [#allocation11], 4
      %s87 = int_to_ptr.vmem [resolvable:$true] %s86
      %92 = dma.hbm_to_vmem [thread:$0]  %s85, 1024, %s87, [#allocation12], 64, 64, 4
    $region25: #{tpu_custom_call.1} parent=1 // pred_fallthru
      _
    // Predicated region
    $region26: #{tpu_custom_call.1} parent=1 // pred_check
      _
    $region27: #{tpu_custom_call.1} parent=1 // pred_check_branch
      %94 = sbr.rel (0) target = $region29
    $region28: #{tpu_custom_call.1} parent=1 // pred_region
      _
    $region29: #{tpu_custom_call.1} parent=1 // pred_fallthru
      _
    // Predicated region
    $region30: #{tpu_custom_call.1} parent=1 // pred_check
      _
    $region31: #{tpu_custom_call.1} parent=1 // pred_check_branch
      %96 = sbr.rel (0) target = $region33
    $region32: #{tpu_custom_call.1} parent=1 // pred_region
      %98 = vsyncadd [#allocation12], 0
      %s99 = sshll.u32 %s7, 4
      %s100 = int_to_ptr.hbm [resolvable:$true] %s99
      %s101 = sshll.u32 [#allocation13], 4
      %s102 = int_to_ptr.vmem [resolvable:$true] %s101
      %107 = dma.hbm_to_vmem [thread:$0]  %s100, 1024, %s102, [#allocation12], 64, 64, 4
    $region33: #{tpu_custom_call.1} parent=1 // pred_fallthru
      _
    // Predicated region
    $region34: #{tpu_custom_call.1} parent=1 // pred_check
      _
    $region35: #{tpu_custom_call.1} parent=1 // pred_check_branch
      %109 = sbr.rel (0) target = $region37
    $region36: #{tpu_custom_call.1} parent=1 // pred_region
      _
    $region37: #{tpu_custom_call.1} parent=1 // pred_fallthru
      _
    // Predicated region
    $region38: #{tpu_custom_call.1} parent=1 // pred_check
      _
    $region39: #{tpu_custom_call.1} parent=1 // pred_check_branch
      %111 = sbr.rel (0) target = $region41
    $region40: #{tpu_custom_call.1} parent=1 // pred_region
      %113 = dma.done [#allocation3], 256
    $region41: #{tpu_custom_call.1} parent=1 // pred_fallthru
      _
    // Predicated region
    $region42: #{tpu_custom_call.1} parent=1 // pred_check
      _
    $region43: #{tpu_custom_call.1} parent=1 // pred_check_branch
      %115 = sbr.rel (0) target = $region45
    $region44: #{tpu_custom_call.1} parent=1 // pred_region
      %117 = dma.done [#allocation6], 704
    $region45: #{tpu_custom_call.1} parent=1 // pred_fallthru
      _
    // Predicated region
    $region46: #{tpu_custom_call.1} parent=1 // pred_check
      _
    $region47: #{tpu_custom_call.1} parent=1 // pred_check_branch
      %119 = sbr.rel (0) target = $region49
    $region48: #{tpu_custom_call.1} parent=1 // pred_region
      %121 = dma.done [#allocation6], 64
    $region49: #{tpu_custom_call.1} parent=1 // pred_fallthru
      _
    // Predicated region
    $region50: #{tpu_custom_call.1} parent=1 // pred_check
      _
    $region51: #{tpu_custom_call.1} parent=1 // pred_check_branch
      %123 = sbr.rel (0) target = $region53
    $region52: #{tpu_custom_call.1} parent=1 // pred_region
      %125 = dma.done [#allocation9], 1024
    $region53: #{tpu_custom_call.1} parent=1 // pred_fallthru
      _
    // Predicated region
    $region54: #{tpu_custom_call.1} parent=1 // pred_check
      _
    $region55: #{tpu_custom_call.1} parent=1 // pred_check_branch
      %127 = sbr.rel (0) target = $region57
    $region56: #{tpu_custom_call.1} parent=1 // pred_region
      %129 = dma.done [#allocation9], 64
    $region57: #{tpu_custom_call.1} parent=1 // pred_fallthru
      _
    // Predicated region
    $region58: #{tpu_custom_call.1} parent=1 // pred_check
      _
    $region59: #{tpu_custom_call.1} parent=1 // pred_check_branch
      %131 = sbr.rel (0) target = $region61
    $region60: #{tpu_custom_call.1} parent=1 // pred_region
      %133 = dma.done [#allocation12], 1024
    $region61: #{tpu_custom_call.1} parent=1 // pred_fallthru
      _
    // Predicated region
    $region62: #{tpu_custom_call.1} parent=1 // pred_check
      _
    $region63: #{tpu_custom_call.1} parent=1 // pred_check_branch
      %135 = sbr.rel (0) target = $region65
    $region64: #{tpu_custom_call.1} parent=1 // pred_region
      %137 = dma.done [#allocation12], 1024
    $region65: #{tpu_custom_call.1} parent=1 // pred_fallthru
      _
    %v139 = vld [vmem:[#allocation2] sm:$0xff]
    %v140 = vld [vmem:[#allocation2 + $0x8] sm:$0xff]
    %v141 = vpack.c.bf16 %v140, %v139
    %v142 = vld [vmem:[#allocation5] sm:$0xf]
    %v143 = vld [vmem:[#allocation5 + $0x4] sm:$0xf]
    %v144 = vld [vmem:[#allocation5 + $0x8] sm:$0xf]
    %v145 = vld [vmem:[#allocation5 + $0xc] sm:$0xf]
    %v146 = vld [vmem:[#allocation5 + $0x10] sm:$0xf]
    %v147 = vld [vmem:[#allocation5 + $0x14] sm:$0xf]
    %v148 = vld [vmem:[#allocation5 + $0x18] sm:$0xf]
    %v149 = vld [vmem:[#allocation5 + $0x1c] sm:$0xf]
    %v150 = vld [vmem:[#allocation5 + $0x20] sm:$0xf]
    %v151 = vld [vmem:[#allocation5 + $0x24] sm:$0xf]
    %v152 = vld [vmem:[#allocation5 + $0x28] sm:$0x7]
    %v153 = vld [vmem:[#allocation7] sm:$0x1]
    %v154 = vperm.slane %v153, 0
    %v166 = vunpack.c.l.b16 %v142
    %v167 = vunpack.c.l.b16 %v143
    %v168 = vunpack.c.l.b16 %v144
    %v169 = vunpack.c.l.b16 %v145
    %v170 = vunpack.c.l.b16 %v146
    %v171 = vunpack.c.l.b16 %v147
    %v172 = vunpack.c.l.b16 %v148
    %v173 = vunpack.c.l.b16 %v149
    %v174 = vunpack.c.l.b16 %v150
    %v175 = vunpack.c.l.b16 %v151
    %v176 = vunpack.c.l.b16 %v152
    %v177 = vpack.c.b16 %v167, %v166
    %v178 = vpack.c.b16 %v169, %v168
    %v179 = vpack.c.b16 %v171, %v170
    %v180 = vpack.c.b16 %v173, %v172
    %v181 = vpack.c.b16 %v175, %v174
    %v182 = vpack.c.b16 %v176, %v176
    %vm188 = vcmask 695296
    %v190 = vsel %vm188, %v141, 0
    %vm192 = vcmask 1041408
    %vm193 = vcmask 1042432
    %v194 = vsel %vm192, 4294967295, 65535
    %v195 = vsel %vm193, %v194, 0
    %v197 = vand.u32 %v182, %v195
    %199 = vmatpush.bf16.msra.mxu0 0
    %200 = vmatpush.bf16.msra.mxu0 0
    %201 = vmatpush.bf16.msra.mxu0 %v197
    %202 = vmatpush.bf16.msra.mxu0 %v181
    %203 = vmatpush.bf16.msra.mxu0 %v180
    %204 = vmatpush.bf16.msra.mxu0 %v179
    %205 = vmatpush.bf16.msra.mxu0 %v178
    %206 = vmatpush.bf16.msra.mxu0 %v177
    %207 = vmatmul.bf16.gmra.mxu0 %v190
    %v208 = vpop.f32.mrf.mxu0
    %v209 = vadd.f32 %v154, %v208
    %v210 = vpop.f32.mrf.mxu0
    %v211 = vadd.f32 %v154, %v210
    %212 = vdwg.mxu0
    %213 = vadd.xlane.f32.xlu0 %v209
    %v214 = vpop.xlane.xlu0 %213
    %215 = vadd.xlane.f32.xlu0 %v211
    %v216 = vpop.xlane.xlu0 %215
    %v217 = vmul.f32 %v214, 0.0078125
    %v218 = vmul.f32 %v216, 0.0078125
    %v219 = vsub.f32 %v209, %v217
    %v220 = vsub.f32 %v211, %v218
    %v221 = vmul.f32 %v219, %v219
    %v222 = vmul.f32 %v220, %v220
    %223 = vadd.xlane.f32.xlu0 %v221
    %v224 = vpop.xlane.xlu0 %223
    %225 = vadd.xlane.f32.xlu0 %v222
    %v226 = vpop.xlane.xlu0 %225
    %v227 = vmul.f32 %v224, 0.0078125
    %v228 = vmul.f32 %v226, 0.0078125
    %v229 = vadd.f32 %v227, 1e-05
    %v230 = vadd.f32 %v228, 1e-05
    %v231 = vrsqrt.pop %v229
    %v232 = vmul.f32 %v231, %v229
    %v233 = vmul.f32 %v232, %v231
    %v234 = vmul.f32 0.5, %v233
    %v235 = vsub.f32 1.5, %v234
    %v236 = vmul.f32 %v231, %v235
    %vm237 = vweird.f32 %v229
    %vm238 = vweird.f32 %v231
    %vm239 = vmor %vm237, %vm238
    %v240 = vsel %vm239, %v231, %v236
    %v241 = vrsqrt.pop %v230
    %v242 = vmul.f32 %v241, %v230
    %v243 = vmul.f32 %v242, %v241
    %v244 = vmul.f32 0.5, %v243
    %v245 = vsub.f32 1.5, %v244
    %v246 = vmul.f32 %v241, %v245
    %vm247 = vweird.f32 %v230
    %vm248 = vweird.f32 %v241
    %vm249 = vmor %vm247, %vm248
    %v250 = vsel %vm249, %v241, %v246
    %v251 = vmul.f32 %v219, %v240
    %v252 = vmul.f32 %v220, %v250
    %v253 = vld [vmem:[#allocation7 + $0x1] sm:$0x1]
    %v254 = vperm.slane %v253, 0
    %v255 = vmul.f32 %v251, %v254
    %v256 = vmul.f32 %v252, %v254
    %v257 = vld [vmem:[#allocation7 + $0x2] sm:$0x1]
    %v258 = vperm.slane %v257, 0
    %v259 = vadd.f32 %v255, %v258
    %v260 = vadd.f32 %v256, %v258
    %v261 = vmax.f32 %v259, 0.0
    %v262 = vmax.f32 %v260, 0.0
    %v263 = vpack.c.bf16 %v262, %v261
    %v264 = vld [vmem:[#allocation8] sm:$0xf]
    %v265 = vld [vmem:[#allocation8 + $0x4] sm:$0xf]
    %v266 = vld [vmem:[#allocation8 + $0x8] sm:$0xf]
    %v267 = vld [vmem:[#allocation8 + $0xc] sm:$0xf]
    %v268 = vld [vmem:[#allocation8 + $0x10] sm:$0xf]
    %v269 = vld [vmem:[#allocation8 + $0x14] sm:$0xf]
    %v270 = vld [vmem:[#allocation8 + $0x18] sm:$0xf]
    %v271 = vld [vmem:[#allocation8 + $0x1c] sm:$0xf]
    %v272 = vld [vmem:[#allocation8 + $0x20] sm:$0xf]
    %v273 = vld [vmem:[#allocation8 + $0x24] sm:$0xf]
    %v274 = vld [vmem:[#allocation8 + $0x28] sm:$0xf]
    %v275 = vld [vmem:[#allocation8 + $0x2c] sm:$0xf]
    %v276 = vld [vmem:[#allocation8 + $0x30] sm:$0xf]
    %v277 = vld [vmem:[#allocation8 + $0x34] sm:$0xf]
    %v278 = vld [vmem:[#allocation8 + $0x38] sm:$0xf]
    %v279 = vld [vmem:[#allocation8 + $0x3c] sm:$0xf]
    %v280 = vld [vmem:[#allocation10] sm:$0x1]
    %v281 = vperm.slane %v280, 0
    %v298 = vunpack.c.l.b16 %v264
    %v299 = vunpack.c.l.b16 %v265
    %v300 = vunpack.c.l.b16 %v266
    %v301 = vunpack.c.l.b16 %v267
    %v302 = vunpack.c.l.b16 %v268
    %v303 = vunpack.c.l.b16 %v269
    %v304 = vunpack.c.l.b16 %v270
    %v305 = vunpack.c.l.b16 %v271
    %v306 = vunpack.c.l.b16 %v272
    %v307 = vunpack.c.l.b16 %v273
    %v308 = vunpack.c.l.b16 %v274
    %v309 = vunpack.c.l.b16 %v275
    %v310 = vunpack.c.l.b16 %v276
    %v311 = vunpack.c.l.b16 %v277
    %v312 = vunpack.c.l.b16 %v278
    %v313 = vunpack.c.l.b16 %v279
    %v314 = vpack.c.b16 %v299, %v298
    %v315 = vpack.c.b16 %v301, %v300
    %v316 = vpack.c.b16 %v303, %v302
    %v317 = vpack.c.b16 %v305, %v304
    %v318 = vpack.c.b16 %v307, %v306
    %v319 = vpack.c.b16 %v309, %v308
    %v320 = vpack.c.b16 %v311, %v310
    %v321 = vpack.c.b16 %v313, %v312
    %330 = vmatpush.bf16.msra.mxu0 %v321
    %331 = vmatpush.bf16.msra.mxu0 %v320
    %332 = vmatpush.bf16.msra.mxu0 %v319
    %333 = vmatpush.bf16.msra.mxu0 %v318
    %334 = vmatpush.bf16.msra.mxu0 %v317
    %335 = vmatpush.bf16.msra.mxu0 %v316
    %336 = vmatpush.bf16.msra.mxu0 %v315
    %337 = vmatpush.bf16.msra.mxu0 %v314
    %338 = vmatmul.bf16.gmra.mxu0 %v263
    %v339 = vpop.f32.mrf.mxu0
    %v340 = vadd.f32 %v281, %v339
    %v341 = vpop.f32.mrf.mxu0
    %v342 = vadd.f32 %v281, %v341
    %343 = vdwg.mxu0
    %v344 = vlaneseq
    %v345 = vand.u32 %v344, 127
    %vm346 = vcmp.lt.s32.totalorder %v345, 64
    %347 = vadd.xlane.f32.xlu0 %v340
    %v348 = vpop.xlane.xlu0 %347
    %349 = vadd.xlane.f32.xlu0 %v342
    %v350 = vpop.xlane.xlu0 %349
    %v351 = vmul.f32 %v348, 0.015625
    %v352 = vmul.f32 %v350, 0.015625
    %v353 = vsub.f32 %v340, %v351
    %v354 = vsub.f32 %v342, %v352
    %v355 = vmul.f32 %v353, %v353
    %v356 = vmul.f32 %v354, %v354
    %v357 = vsel %vm346, 1, 0
    %vm358 = vcmp.eq.s32.totalorder %v357, 1
    %v359 = vsel %vm358, %v355, 0.0
    %v360 = vsel %vm358, %v356, 0.0
    %361 = vadd.xlane.f32.xlu0 %v359
    %v362 = vpop.xlane.xlu0 %361
    %363 = vadd.xlane.f32.xlu0 %v360
    %v364 = vpop.xlane.xlu0 %363
    %v365 = vmul.f32 %v362, 0.015625
    %v366 = vmul.f32 %v364, 0.015625
    %v367 = vadd.f32 %v365, 1e-05
    %v368 = vadd.f32 %v366, 1e-05
    %v369 = vrsqrt.pop %v367
    %v370 = vmul.f32 %v369, %v367
    %v371 = vmul.f32 %v370, %v369
    %v372 = vmul.f32 0.5, %v371
    %v373 = vsub.f32 1.5, %v372
    %v374 = vmul.f32 %v369, %v373
    %vm375 = vweird.f32 %v367
    %vm376 = vweird.f32 %v369
    %vm377 = vmor %vm375, %vm376
    %v378 = vsel %vm377, %v369, %v374
    %v379 = vrsqrt.pop %v368
    %v380 = vmul.f32 %v379, %v368
    %v381 = vmul.f32 %v380, %v379
    %v382 = vmul.f32 0.5, %v381
    %v383 = vsub.f32 1.5, %v382
    %v384 = vmul.f32 %v379, %v383
    %vm385 = vweird.f32 %v368
    %vm386 = vweird.f32 %v379
    %vm387 = vmor %vm385, %vm386
    %v388 = vsel %vm387, %v379, %v384
    %v389 = vmul.f32 %v353, %v378
    %v390 = vmul.f32 %v354, %v388
    %v391 = vld [vmem:[#allocation10 + $0x1] sm:$0x1]
    %v392 = vperm.slane %v391, 0
    %v393 = vmul.f32 %v389, %v392
    %v394 = vmul.f32 %v390, %v392
    %v395 = vld [vmem:[#allocation10 + $0x2] sm:$0x1]
    %v396 = vperm.slane %v395, 0
    %v397 = vadd.f32 %v393, %v396
    %v398 = vadd.f32 %v394, %v396
    %v399 = vmax.f32 %v397, 0.0
    %v400 = vmax.f32 %v398, 0.0
    %v401 = vpack.c.bf16 %v400, %v399
    %v402 = vld [vmem:[#allocation11] sm:$0xf]
    %v403 = vld [vmem:[#allocation11 + $0x4] sm:$0xf]
    %v404 = vld [vmem:[#allocation11 + $0x8] sm:$0xf]
    %v405 = vld [vmem:[#allocation11 + $0xc] sm:$0xf]
    %v406 = vld [vmem:[#allocation11 + $0x10] sm:$0xf]
    %v407 = vld [vmem:[#allocation11 + $0x14] sm:$0xf]
    %v408 = vld [vmem:[#allocation11 + $0x18] sm:$0xf]
    %v409 = vld [vmem:[#allocation11 + $0x1c] sm:$0xf]
    %v410 = vld [vmem:[#allocation11 + $0x20] sm:$0xf]
    %v411 = vld [vmem:[#allocation11 + $0x24] sm:$0xf]
    %v412 = vld [vmem:[#allocation11 + $0x28] sm:$0xf]
    %v413 = vld [vmem:[#allocation11 + $0x2c] sm:$0xf]
    %v414 = vld [vmem:[#allocation11 + $0x30] sm:$0xf]
    %v415 = vld [vmem:[#allocation11 + $0x34] sm:$0xf]
    %v416 = vld [vmem:[#allocation11 + $0x38] sm:$0xf]
    %v417 = vld [vmem:[#allocation11 + $0x3c] sm:$0xf]
    %v418 = vld [vmem:[%s6] sm:$0x1]
    %v420 = vperm.slane %v418, 0
    %v438 = vunpack.c.l.b16 %v402
    %v439 = vunpack.c.l.b16 %v403
    %v440 = vunpack.c.l.b16 %v404
    %v441 = vunpack.c.l.b16 %v405
    %v442 = vunpack.c.l.b16 %v406
    %v443 = vunpack.c.l.b16 %v407
    %v444 = vunpack.c.l.b16 %v408
    %v445 = vunpack.c.l.b16 %v409
    %v446 = vunpack.c.l.b16 %v410
    %v447 = vunpack.c.l.b16 %v411
    %v448 = vunpack.c.l.b16 %v412
    %v449 = vunpack.c.l.b16 %v413
    %v450 = vunpack.c.l.b16 %v414
    %v451 = vunpack.c.l.b16 %v415
    %v452 = vunpack.c.l.b16 %v416
    %v453 = vunpack.c.l.b16 %v417
    %v454 = vpack.c.b16 %v439, %v438
    %v455 = vpack.c.b16 %v441, %v440
    %v456 = vpack.c.b16 %v443, %v442
    %v457 = vpack.c.b16 %v445, %v444
    %v458 = vpack.c.b16 %v447, %v446
    %v459 = vpack.c.b16 %v449, %v448
    %v460 = vpack.c.b16 %v451, %v450
    %v461 = vpack.c.b16 %v453, %v452
    %470 = vmatpush.bf16.msra.mxu0 %v461
    %471 = vmatpush.bf16.msra.mxu0 %v460
    %472 = vmatpush.bf16.msra.mxu0 %v459
    %473 = vmatpush.bf16.msra.mxu0 %v458
    %474 = vmatpush.bf16.msra.mxu0 %v457
    %475 = vmatpush.bf16.msra.mxu0 %v456
    %476 = vmatpush.bf16.msra.mxu0 %v455
    %477 = vmatpush.bf16.msra.mxu0 %v454
    %478 = vmatmul.bf16.gmra.mxu0 %v401
    %v479 = vpop.f32.mrf.mxu0
    %v480 = vadd.f32 %v420, %v479
    %v481 = vpop.f32.mrf.mxu0
    %v482 = vadd.f32 %v420, %v481
    %483 = vdwg.mxu0
    %v484 = vmax.f32 %v480, 0.0
    %v485 = vmax.f32 %v482, 0.0
    %v486 = vpack.c.bf16 %v485, %v484
    %v487 = vld [vmem:[#allocation13] sm:$0xf]
    %v488 = vld [vmem:[#allocation13 + $0x4] sm:$0xf]
    %v489 = vld [vmem:[#allocation13 + $0x8] sm:$0xf]
    %v490 = vld [vmem:[#allocation13 + $0xc] sm:$0xf]
    %v491 = vld [vmem:[#allocation13 + $0x10] sm:$0xf]
    %v492 = vld [vmem:[#allocation13 + $0x14] sm:$0xf]
    %v493 = vld [vmem:[#allocation13 + $0x18] sm:$0xf]
    %v494 = vld [vmem:[#allocation13 + $0x1c] sm:$0xf]
    %v495 = vld [vmem:[#allocation13 + $0x20] sm:$0xf]
    %v496 = vld [vmem:[#allocation13 + $0x24] sm:$0xf]
    %v497 = vld [vmem:[#allocation13 + $0x28] sm:$0xf]
    %v498 = vld [vmem:[#allocation13 + $0x2c] sm:$0xf]
    %v499 = vld [vmem:[#allocation13 + $0x30] sm:$0xf]
    %v500 = vld [vmem:[#allocation13 + $0x34] sm:$0xf]
    %v501 = vld [vmem:[#allocation13 + $0x38] sm:$0xf]
    %v502 = vld [vmem:[#allocation13 + $0x3c] sm:$0xf]
    %v503 = vld [vmem:[%s8] sm:$0x1]
    %v505 = vperm.slane %v503, 0
    %v523 = vunpack.c.l.b16 %v487
    %v524 = vunpack.c.l.b16 %v488
    %v525 = vunpack.c.l.b16 %v489
    %v526 = vunpack.c.l.b16 %v490
    %v527 = vunpack.c.l.b16 %v491
    %v528 = vunpack.c.l.b16 %v492
    %v529 = vunpack.c.l.b16 %v493
    %v530 = vunpack.c.l.b16 %v494
    %v531 = vunpack.c.l.b16 %v495
    %v532 = vunpack.c.l.b16 %v496
    %v533 = vunpack.c.l.b16 %v497
    %v534 = vunpack.c.l.b16 %v498
    %v535 = vunpack.c.l.b16 %v499
    %v536 = vunpack.c.l.b16 %v500
    %v537 = vunpack.c.l.b16 %v501
    %v538 = vunpack.c.l.b16 %v502
    %v539 = vpack.c.b16 %v524, %v523
    %v540 = vpack.c.b16 %v526, %v525
    %v541 = vpack.c.b16 %v528, %v527
    %v542 = vpack.c.b16 %v530, %v529
    %v543 = vpack.c.b16 %v532, %v531
    %v544 = vpack.c.b16 %v534, %v533
    %v545 = vpack.c.b16 %v536, %v535
    %v546 = vpack.c.b16 %v538, %v537
    %555 = vmatpush.bf16.msra.mxu0 %v546
    %556 = vmatpush.bf16.msra.mxu0 %v545
    %557 = vmatpush.bf16.msra.mxu0 %v544
    %558 = vmatpush.bf16.msra.mxu0 %v543
    %559 = vmatpush.bf16.msra.mxu0 %v542
    %560 = vmatpush.bf16.msra.mxu0 %v541
    %561 = vmatpush.bf16.msra.mxu0 %v540
    %562 = vmatpush.bf16.msra.mxu0 %v539
    %563 = vmatmul.bf16.gmra.mxu0 %v486
    %v564 = vpop.f32.mrf.mxu0
    %v565 = vadd.f32 %v505, %v564
    %v566 = vpop.f32.mrf.mxu0
    %v567 = vadd.f32 %v505, %v566
    %568 = vdwg.mxu0
    %569 = vst [vmem:[#allocation14] sm:$0xff] %v565
    %570 = vst [vmem:[#allocation14 + $0x8] sm:$0xff] %v567
    // Predicated region
    $region66: #{tpu_custom_call.1} parent=1 // pred_check
      _
    $region67: #{tpu_custom_call.1} parent=1 // pred_check_branch
      %572 = sbr.rel (0) target = $region69
    $region68: #{tpu_custom_call.1} parent=1 // pred_region
      %574 = vsyncadd [#allocation4], 0
      %s575 = sshll.u32 [#allocation14], 4
      %s576 = int_to_ptr.vmem [resolvable:$true] %s575
      %s577 = sshll.u32 %s9, 4
      %s578 = int_to_ptr.hbm [resolvable:$true] %s577
      %583 = dma.vmem_to_hbm [thread:$0]  %s576, 256, %s578, [#allocation4], 128, 128, 8
    $region69: #{tpu_custom_call.1} parent=1 // pred_fallthru
      _
    // Predicated region
    $region70: #{tpu_custom_call.1} parent=1 // pred_check
      _
    $region71: #{tpu_custom_call.1} parent=1 // pred_check_branch
      %585 = sbr.rel (0) target = $region73
    $region72: #{tpu_custom_call.1} parent=1 // pred_region
      %587 = dma.done [#allocation4], 256
    $region73: #{tpu_custom_call.1} parent=1 // pred_fallthru
      _
    %588 = vsyncpa [#allocation3], 1
    %589 = vsyncpa [#allocation6], 1
    %590 = vsyncpa [#allocation9], 1
    %591 = vsyncpa [#allocation12], 1
    %592 = vsyncpa [#allocation4], 1

</llo_original>
